<compile_context>
chip_gen: v5e
topology: v5e:2x2
jax: 0.10.0
libtpu: 0.0.40
codegen_flags: <defaults>
</compile_context>

<pallas_src>
import functools

import jax
import jax.numpy as jnp
from jax.experimental import pallas as pl
from jax.experimental.pallas import tpu as pltpu


OUT_LANES = 8  # adv in lanes 0-1, value in lane 2, lanes 3-7 zero padding.


# ---------------------------------------------------------------------------
# Kernel: fused 3-layer MLP, one batch tile per grid step.
# ---------------------------------------------------------------------------
def dqn_fused_kernel(x_ref, w1_ref, w2_ref, b2_ref, w3_ref, b3_ref, out_ref,
                     *, bf16_epilogue):
    mm_dtype = w1_ref.dtype
    act_dtype = jnp.bfloat16 if bf16_epilogue else jnp.float32

    # Layer 1: (TB, 5) @ (5, 512) -> (TB, 512).  b1 is folded into row 4 of W1
    # (the 5th input feature is a constant 1), so there is no bias add here.
    x = x_ref[...].astype(mm_dtype)                      # 5 lanes, negligible cast
    h1 = jnp.dot(x, w1_ref[...], preferred_element_type=jnp.float32)
    h1 = jnp.maximum(h1.astype(act_dtype), 0.0)          # ReLU in epilogue dtype

    # Layer 2 (block-diagonal adv/val): (TB, 512) @ (512, 128) -> (TB, 128).
    h2 = jnp.dot(h1.astype(mm_dtype), w2_ref[...],
                 preferred_element_type=jnp.float32)
    h2 = jnp.maximum(h2.astype(act_dtype) + b2_ref[...].astype(act_dtype), 0.0)

    # Fused heads: full lane-dense (TB,128)@(128,128) dot, but only the first
    # OUT_LANES lanes are useful -> store the narrow slice (masked vst is fine,
    # the vst slot has slack; saves 16x HBM writeback).
    h3 = jnp.dot(h2.astype(mm_dtype), w3_ref[...],
                 preferred_element_type=jnp.float32)
    out_ref[...] = h3[:, :OUT_LANES] + b3_ref[...]


# ---------------------------------------------------------------------------
# Parameter packing (done once in the wrapper).
# ---------------------------------------------------------------------------
def fuse_params(params, matmul_dtype=jnp.float32):
    """Pack the 12 per-branch tensors into fused lane-dense layers.

    layer1: (5, 512)  = [w1a | w1v] with b1 folded into row 4 (constant-1 input)
    layer2: (512,128) = [[w2a, 0], [0, w2v]] (block-diagonal), bias (1,128)
    head:   (128,128) with cols 0-1 <- w3a, col 2 <- w3v; bias (1, OUT_LANES)
    """
    (w1a, b1a, w2a, b2a, w3a, b3a,
     w1v, b1v, w2v, b2v, w3v, b3v) = params

    W1 = jnp.zeros((5, 512), jnp.float32)
    W1 = W1.at[:4, :256].set(w1a).at[:4, 256:].set(w1v)
    W1 = W1.at[4, :256].set(b1a[0]).at[4, 256:].set(b1v[0])   # folded biases

    W2 = jnp.zeros((512, 128), jnp.float32)
    W2 = W2.at[:256, :64].set(w2a).at[256:, 64:].set(w2v)     # block-diagonal
    b2 = jnp.concatenate([b2a, b2v], axis=1)                  # (1, 128)

    W3 = jnp.zeros((128, 128), jnp.float32)
    W3 = W3.at[:64, 0:2].set(w3a).at[64:, 2:3].set(w3v)
    b3 = jnp.zeros((1, OUT_LANES), jnp.float32)
    b3 = b3.at[:, 0:2].set(b3a).at[:, 2:3].set(b3v)

    return (W1.astype(matmul_dtype), W2.astype(matmul_dtype), b2,
            W3.astype(matmul_dtype), b3)


def default_config():
    """Generation-aware defaults (matmul dtype bf16 everywhere; epilogue/tile per chip)."""
    try:
        kind = jax.devices()[0].device_kind.lower()
    except Exception:  # pragma: no cover - defensive
        kind = ""
    if "v4" in kind or "v5" in kind:
        # No bf16 VALU; 16 MiB scoped-VMEM default -> keep f32 epilogue, TB=1024.
        return dict(bf16_epilogue=False, block_b=1024, min_tiles=1)
    if "v6" in kind:
        return dict(bf16_epilogue=True, block_b=4096, min_tiles=1)
    # v7x and newer: 2 TensorCores, 64 MiB VMEM -> cap TB at 4096, want >=2 tiles.
    return dict(bf16_epilogue=True, block_b=4096, min_tiles=2)


def _round_up(a, b):
    return -(-a // b) * b


# ---------------------------------------------------------------------------
# Wrapper
# ---------------------------------------------------------------------------
def dqn_forward(state, fused_params, *, block_b=2048, bf16_epilogue=False,
                min_tiles=1):
    """state: (B, 4) f32.  fused_params: output of fuse_params().  -> (B, 2)."""
    W1, W2, b2, W3, b3 = fused_params
    B = state.shape[0]

    SUB = 8  # f32 input/output tiles -> sublane multiple of 8.
    Bp0 = _round_up(B, SUB)
    # Tile the batch: at most block_b rows per tile, at least `min_tiles` tiles
    # when the batch is big enough (keeps both v7x TensorCores busy).
    TB = min(block_b, _round_up(pl.cdiv(Bp0, max(min_tiles, 1)), SUB))
    num_tiles = pl.cdiv(Bp0, TB)
    Bp = num_tiles * TB

    # Pack state as (Bp, 5) f32: features in cols 0-3, constant 1 in col 4
    # (carries the folded layer-1 bias).  Stays f32; the kernel casts the tile.
    x = jnp.zeros((Bp, 5), jnp.float32)
    x = x.at[:B, :4].set(state.astype(jnp.float32))
    x = x.at[:B, 4].set(1.0)

    kernel = functools.partial(dqn_fused_kernel, bf16_epilogue=bf16_epilogue)

    slab = pl.pallas_call(
        kernel,
        out_shape=jax.ShapeDtypeStruct((Bp, OUT_LANES), jnp.float32),
        grid=(num_tiles,),
        in_specs=[
            pl.BlockSpec((TB, 5), lambda i: (i, 0)),        # state tile
            pl.BlockSpec((5, 512), lambda i: (0, 0)),       # W1 (+b1), resident
            pl.BlockSpec((512, 128), lambda i: (0, 0)),     # W2, resident
            pl.BlockSpec((1, 128), lambda i: (0, 0)),       # b2
            pl.BlockSpec((128, 128), lambda i: (0, 0)),     # W3
            pl.BlockSpec((1, OUT_LANES), lambda i: (0, 0)), # b3
        ],
        out_specs=pl.BlockSpec((TB, OUT_LANES), lambda i: (i, 0)),
        compiler_params=pltpu.CompilerParams(
            dimension_semantics=("parallel",)),
    )(x, W1, W2, b2, W3, b3)

    # Dueling combine with the exact GLOBAL scalar mean over the real batch
    # rows only (padded rows and padding lanes excluded).
    adv = slab[:B, 0:2]
    val = slab[:B, 2:3]
    return val + adv - jnp.mean(adv)


# ---------------------------------------------------------------------------
# Parameter init mimicking torch.nn.Linear (uniform +/- 1/sqrt(fan_in))
# ---------------------------------------------------------------------------
def init_linear(key, fan_in, fan_out):
    kw, kb = jax.random.split(key)
    bound = 1.0 / jnp.sqrt(float(fan_in))
    w = jax.random.uniform(kw, (fan_in, fan_out), jnp.float32, -bound, bound)
    b = jax.random.uniform(kb, (1, fan_out), jnp.float32, -bound, bound)
    return w, b


def init_params(key):
    keys = jax.random.split(key, 6)
    w1a, b1a = init_linear(keys[0], 4, 256)    # advantage: 4 -> 256 -> 64 -> 2
    w2a, b2a = init_linear(keys[1], 256, 64)
    w3a, b3a = init_linear(keys[2], 64, 2)
    w1v, b1v = init_linear(keys[3], 4, 256)    # value:     4 -> 256 -> 64 -> 1
    w2v, b2v = init_linear(keys[4], 256, 64)
    w3v, b3v = init_linear(keys[5], 64, 1)
    return (w1a, b1a, w2a, b2a, w3a, b3a,
            w1v, b1v, w2v, b2v, w3v, b3v)


def dqn_forward_ref(state, params):
    """Pure-JAX reference (matches PyTorch forward semantics)."""
    (w1a, b1a, w2a, b2a, w3a, b3a,
     w1v, b1v, w2v, b2v, w3v, b3v) = params
    ha = jnp.maximum(state @ w1a + b1a, 0.0)
    ha = jnp.maximum(ha @ w2a + b2a, 0.0)
    adv = ha @ w3a + b3a
    hv = jnp.maximum(state @ w1v + b1v, 0.0)
    hv = jnp.maximum(hv @ w2v + b2v, 0.0)
    val = hv @ w3v + b3v
    return val + adv - jnp.mean(adv)


if __name__ == "__main__":
    key = jax.random.PRNGKey(0)
    k_params, k_state = jax.random.split(key)

    params = init_params(k_params)
    # CartPole observation: 4 features.  Small batch of 8 states.
    state = jax.random.normal(k_state, (8, 4), dtype=jnp.float32)

    q_ref = dqn_forward_ref(state, params)

    # f32 matmul path: exact parity with the reference.
    fused_f32 = fuse_params(params, jnp.float32)
    q = jax.block_until_ready(
        dqn_forward(state, fused_f32, block_b=1024, bf16_epilogue=False))
    assert q.shape == (8, 2)
    assert jnp.allclose(q, q_ref, atol=1e-5, rtol=1e-5), "f32 mismatch vs reference"

    # bf16 MXU path with generation-tuned epilogue / tiling defaults.
    cfg = default_config()
    fused_bf16 = fuse_params(params, jnp.bfloat16)
    q16 = jax.block_until_ready(
        dqn_forward(state, fused_bf16, block_b=cfg["block_b"],
                    bf16_epilogue=cfg["bf16_epilogue"],
                    min_tiles=cfg["min_tiles"]))
    assert q16.shape == (8, 2)
    assert jnp.allclose(q16, q_ref, atol=1e-1, rtol=1e-1), "bf16 mismatch vs reference"

    # TODO(synk): MSELoss / Adam / DQNtrain / epsilon-greedy GetAction are
    # training-time / host-side ops, not part of the forward pass; not ported.
    print("KERNEL_OK")
</pallas_src>

<mosaic_0001>
module attributes {stable_mosaic.version = 11 : i64} {
  func.func @dqn_fused_kernel(%arg0: i32, %arg1: memref<8x5xf32, #tpu.memory_space<vmem>>, %arg2: memref<5x512xf32, #tpu.memory_space<vmem>>, %arg3: memref<512x128xf32, #tpu.memory_space<vmem>>, %arg4: memref<1x128xf32, #tpu.memory_space<vmem>>, %arg5: memref<128x128xf32, #tpu.memory_space<vmem>>, %arg6: memref<1x8xf32, #tpu.memory_space<vmem>>, %arg7: memref<8x8xf32, #tpu.memory_space<vmem>>) attributes {dimension_semantics = [#tpu.dimension_semantics<parallel>], iteration_bounds = array<i64: 1>, scalar_prefetch = 0 : i64, scratch_operands = 0 : i64, tpu.core_type = #tpu.core_type<tc>, window_params = [{transform_indices = @transform_0, window_bounds = array<i64: 8, 5>}, {pipeline_mode = #tpu.pipeline_mode<synchronous>, transform_indices = @transform_1, window_bounds = array<i64: 5, 512>}, {pipeline_mode = #tpu.pipeline_mode<synchronous>, transform_indices = @transform_2, window_bounds = array<i64: 512, 128>}, {pipeline_mode = #tpu.pipeline_mode<synchronous>, transform_indices = @transform_3, window_bounds = array<i64: 1, 128>}, {pipeline_mode = #tpu.pipeline_mode<synchronous>, transform_indices = @transform_4, window_bounds = array<i64: 128, 128>}, {pipeline_mode = #tpu.pipeline_mode<synchronous>, transform_indices = @transform_5, window_bounds = array<i64: 1, 8>}, {transform_indices = @transform_6, window_bounds = array<i64: 8, 8>}]} {
    %c0 = arith.constant 0 : index
    %c0_0 = arith.constant 0 : index
    %0 = vector.load %arg1[%c0, %c0_0] : memref<8x5xf32, #tpu.memory_space<vmem>>, vector<8x5xf32>
    %c0_1 = arith.constant 0 : index
    %c0_2 = arith.constant 0 : index
    %1 = vector.load %arg2[%c0_1, %c0_2] : memref<5x512xf32, #tpu.memory_space<vmem>>, vector<5x512xf32>
    %cst = arith.constant dense<0.000000e+00> : vector<8x512xf32>
    %2 = tpu.matmul %0, %1, %cst {dimension_numbers = #tpu.dot_dimension_numbers<[1], [0], [0], [1], [0, 0, 1, 1], [], []>} : vector<8x5xf32>, vector<5x512xf32>, vector<8x512xf32> -> vector<8x512xf32>
    %cst_3 = arith.constant 0.000000e+00 : f32
    %3 = vector.broadcast %cst_3 : f32 to vector<8x512xf32>
    %4 = arith.maximumf %2, %3 : vector<8x512xf32>
    %c0_4 = arith.constant 0 : index
    %c0_5 = arith.constant 0 : index
    %5 = vector.load %arg3[%c0_4, %c0_5] : memref<512x128xf32, #tpu.memory_space<vmem>>, vector<512x128xf32>
    %cst_6 = arith.constant dense<0.000000e+00> : vector<8x128xf32>
    %6 = tpu.matmul %4, %5, %cst_6 {dimension_numbers = #tpu.dot_dimension_numbers<[1], [0], [0], [1], [0, 0, 1, 1], [], []>} : vector<8x512xf32>, vector<512x128xf32>, vector<8x128xf32> -> vector<8x128xf32>
    %c0_7 = arith.constant 0 : index
    %c0_8 = arith.constant 0 : index
    %7 = vector.load %arg4[%c0_7, %c0_8] : memref<1x128xf32, #tpu.memory_space<vmem>>, vector<1x128xf32>
    %8 = vector.broadcast %7 : vector<1x128xf32> to vector<8x128xf32>
    %9 = arith.addf %6, %8 : vector<8x128xf32>
    %cst_9 = arith.constant 0.000000e+00 : f32
    %10 = vector.broadcast %cst_9 : f32 to vector<8x128xf32>
    %11 = arith.maximumf %9, %10 : vector<8x128xf32>
    %c0_10 = arith.constant 0 : index
    %c0_11 = arith.constant 0 : index
    %12 = vector.load %arg5[%c0_10, %c0_11] : memref<128x128xf32, #tpu.memory_space<vmem>>, vector<128x128xf32>
    %cst_12 = arith.constant dense<0.000000e+00> : vector<8x128xf32>
    %13 = tpu.matmul %11, %12, %cst_12 {dimension_numbers = #tpu.dot_dimension_numbers<[1], [0], [0], [1], [0, 0, 1, 1], [], []>} : vector<8x128xf32>, vector<128x128xf32>, vector<8x128xf32> -> vector<8x128xf32>
    %14 = vector.extract_strided_slice %13 {offsets = [0, 0], sizes = [8, 8], strides = [1, 1]} : vector<8x128xf32> to vector<8x8xf32>
    %c0_13 = arith.constant 0 : index
    %c0_14 = arith.constant 0 : index
    %15 = vector.load %arg6[%c0_13, %c0_14] : memref<1x8xf32, #tpu.memory_space<vmem>>, vector<1x8xf32>
    %16 = vector.broadcast %15 : vector<1x8xf32> to vector<8x8xf32>
    %17 = arith.addf %14, %16 : vector<8x8xf32>
    %c0_15 = arith.constant 0 : index
    %c0_16 = arith.constant 0 : index
    %18 = vector.load %arg7[%c0_15, %c0_16] : memref<8x8xf32, #tpu.memory_space<vmem>>, vector<8x8xf32>
    tpu.vector_store %arg7[%c0_15, %c0_16], %17 {strides = array<i32>} : memref<8x8xf32, #tpu.memory_space<vmem>>, vector<8x8xf32>,
    return
  }
  func.func @transform_0(%arg0: i32) -> (i32, i32) {
    %c0_i32 = arith.constant 0 : i32
    %c0_i32_0 = arith.constant 0 : i32
    return %arg0, %c0_i32 : i32, i32
  }
  func.func @transform_1(%arg0: i32) -> (i32, i32) {
    %c0_i32 = arith.constant 0 : i32
    %c0_i32_0 = arith.constant 0 : i32
    %c0_i32_1 = arith.constant 0 : i32
    return %c0_i32, %c0_i32_0 : i32, i32
  }
  func.func @transform_2(%arg0: i32) -> (i32, i32) {
    %c0_i32 = arith.constant 0 : i32
    %c0_i32_0 = arith.constant 0 : i32
    %c0_i32_1 = arith.constant 0 : i32
    return %c0_i32, %c0_i32_0 : i32, i32
  }
  func.func @transform_3(%arg0: i32) -> (i32, i32) {
    %c0_i32 = arith.constant 0 : i32
    %c0_i32_0 = arith.constant 0 : i32
    %c0_i32_1 = arith.constant 0 : i32
    return %c0_i32, %c0_i32_0 : i32, i32
  }
  func.func @transform_4(%arg0: i32) -> (i32, i32) {
    %c0_i32 = arith.constant 0 : i32
    %c0_i32_0 = arith.constant 0 : i32
    %c0_i32_1 = arith.constant 0 : i32
    return %c0_i32, %c0_i32_0 : i32, i32
  }
  func.func @transform_5(%arg0: i32) -> (i32, i32) {
    %c0_i32 = arith.constant 0 : i32
    %c0_i32_0 = arith.constant 0 : i32
    %c0_i32_1 = arith.constant 0 : i32
    return %c0_i32, %c0_i32_0 : i32, i32
  }
  func.func @transform_6(%arg0: i32) -> (i32, i32) {
    %c0_i32 = arith.constant 0 : i32
    %c0_i32_0 = arith.constant 0 : i32
    return %arg0, %c0_i32 : i32, i32
  }
}

</mosaic_0001>

<llo_original>
// kernel: tpu_custom_call.1
$region0: #{tpu_custom_call.1}
  #allocation0 [shape = 'u32[]', space=smem, size = 0x4, offset = 0x4, fixed_abs, tag = 'smem constant byte address 0x4 - core index']
  #allocation1 [shape = 'u32[72,128]{1,0:T(1,128)}', space=vmem, size = 0x9000, scoped, tag = 'internal scratch']
  %s0 = inlined_call_operand.hbm [shape: f32[8,5], index: 0, kind: input, shape index: {}]
  %s1 = inlined_call_operand.hbm [shape: f32[5,512], index: 1, kind: input, shape index: {}]
  %s2 = inlined_call_operand.hbm [shape: f32[512,128], index: 2, kind: input, shape index: {}]
  %s3 = inlined_call_operand.vmem [shape: f32[1,128], index: 3, kind: input, shape index: {}]
  %s4 = inlined_call_operand.hbm [shape: f32[128,128], index: 4, kind: input, shape index: {}]
  %s5 = inlined_call_operand.vmem [shape: f32[1,8], index: 5, kind: input, shape index: {}]
  %s6 = inlined_call_operand.hbm [shape: f32[8,8], index: 6, kind: output, shape index: {}]
  %s7 = sld [smem:[#allocation0]]
  $region50: #{tpu_custom_call.1} parent=0
    _
  %s9 = ssub.s32 1, %s7
  %s10 = scalar_select 0, %s9, %s7
  $region1: #{tpu_custom_call.1} parent=0
    #allocation2 [shape = 'u8[4096]{0}', space=vmem, size = 0x1000, scoped, tag = 'input window, operand 0, single buffered']
    #allocation3 [shape = 's32[1]{0}', space=sflag, size = 0x4, scoped, tag = 'scoped memory for tpu_custom_call.1']
    #allocation4 [shape = 's32[1]{0}', space=sflag, size = 0x4, scoped, tag = 'scoped memory for tpu_custom_call.1']
    #allocation5 [shape = 'u8[16384]{0}', space=vmem, size = 0x4000, scoped, tag = 'input window, operand 1, single buffered']
    #allocation6 [shape = 's32[1]{0}', space=sflag, size = 0x4, scoped, tag = 'scoped memory for tpu_custom_call.1']
    #allocation7 [shape = 'u8[262144]{0}', space=vmem, size = 0x40000, scoped, tag = 'input window, operand 2, single buffered']
    #allocation8 [shape = 'u8[65536]{0}', space=vmem, size = 0x10000, scoped, tag = 'input window, operand 4, single buffered']
    #allocation9 [shape = 's32[1]{0}', space=sflag, size = 0x4, scoped, tag = 'scoped memory for tpu_custom_call.1']
    #allocation10 [shape = 'u8[4096]{0}', space=vmem, size = 0x1000, scoped, tag = 'output window, operand 0, single buffered']
    %11 = vsyncpa [#allocation3], 0
    %12 = vsyncpa [#allocation6], 0
    %13 = vsyncpa [#allocation9], 0
    %14 = vsyncpa [#allocation4], 0
    // Predicated region
    $region2: #{tpu_custom_call.1} parent=1 // pred_check
      _
    $region3: #{tpu_custom_call.1} parent=1 // pred_check_branch
      %16 = sbr.rel (0) target = $region5
    $region4: #{tpu_custom_call.1} parent=1 // pred_region
      %18 = vsyncadd [#allocation3], 0
      %s20 = sshll.u32 %s0, 4
      %s21 = int_to_ptr.hbm [resolvable:$true] %s20
      %s22 = sshll.u32 [#allocation2], 4
      %s23 = int_to_ptr.vmem [resolvable:$true] %s22
      %25 = dma.hbm_to_vmem [thread:$0]  %s21, 128, %s23, [#allocation3]
    $region5: #{tpu_custom_call.1} parent=1 // pred_fallthru
      _
    // Predicated region
    $region6: #{tpu_custom_call.1} parent=1 // pred_check
      _
    $region7: #{tpu_custom_call.1} parent=1 // pred_check_branch
      %27 = sbr.rel (0) target = $region9
    $region8: #{tpu_custom_call.1} parent=1 // pred_region
      %29 = vsyncadd [#allocation6], 0
      %s31 = sshll.u32 %s1, 4
      %s32 = int_to_ptr.hbm [resolvable:$true] %s31
      %s33 = sshll.u32 [#allocation5], 4
      %s34 = int_to_ptr.vmem [resolvable:$true] %s33
      %36 = dma.hbm_to_vmem [thread:$0]  %s32, 512, %s34, [#allocation6]
    $region9: #{tpu_custom_call.1} parent=1 // pred_fallthru
      _
    // Predicated region
    $region10: #{tpu_custom_call.1} parent=1 // pred_check
      _
    $region11: #{tpu_custom_call.1} parent=1 // pred_check_branch
      %38 = sbr.rel (0) target = $region13
    $region12: #{tpu_custom_call.1} parent=1 // pred_region
      %40 = vsyncadd [#allocation6], 0
      %s41 = sshll.u32 %s2, 4
      %s42 = int_to_ptr.hbm [resolvable:$true] %s41
      %s43 = sshll.u32 [#allocation7], 4
      %s44 = int_to_ptr.vmem [resolvable:$true] %s43
      %49 = dma.hbm_to_vmem [thread:$0]  %s42, 8192, %s44, [#allocation6], 128, 128, 8
    $region13: #{tpu_custom_call.1} parent=1 // pred_fallthru
      _
    // Predicated region
    $region14: #{tpu_custom_call.1} parent=1 // pred_check
      _
    $region15: #{tpu_custom_call.1} parent=1 // pred_check_branch
      %51 = sbr.rel (0) target = $region17
    $region16: #{tpu_custom_call.1} parent=1 // pred_region
      _
    $region17: #{tpu_custom_call.1} parent=1 // pred_fallthru
      _
    // Predicated region
    $region18: #{tpu_custom_call.1} parent=1 // pred_check
      _
    $region19: #{tpu_custom_call.1} parent=1 // pred_check_branch
      %53 = sbr.rel (0) target = $region21
    $region20: #{tpu_custom_call.1} parent=1 // pred_region
      %55 = vsyncadd [#allocation9], 0
      %s56 = sshll.u32 %s4, 4
      %s57 = int_to_ptr.hbm [resolvable:$true] %s56
      %s58 = sshll.u32 [#allocation8], 4
      %s59 = int_to_ptr.vmem [resolvable:$true] %s58
      %64 = dma.hbm_to_vmem [thread:$0]  %s57, 2048, %s59, [#allocation9], 128, 128, 8
    $region21: #{tpu_custom_call.1} parent=1 // pred_fallthru
      _
    // Predicated region
    $region22: #{tpu_custom_call.1} parent=1 // pred_check
      _
    $region23: #{tpu_custom_call.1} parent=1 // pred_check_branch
      %66 = sbr.rel (0) target = $region25
    $region24: #{tpu_custom_call.1} parent=1 // pred_region
      _
    $region25: #{tpu_custom_call.1} parent=1 // pred_fallthru
      _
    // Predicated region
    $region26: #{tpu_custom_call.1} parent=1 // pred_check
      _
    $region27: #{tpu_custom_call.1} parent=1 // pred_check_branch
      %68 = sbr.rel (0) target = $region29
    $region28: #{tpu_custom_call.1} parent=1 // pred_region
      %70 = dma.done [#allocation3], 128
    $region29: #{tpu_custom_call.1} parent=1 // pred_fallthru
      _
    // Predicated region
    $region30: #{tpu_custom_call.1} parent=1 // pred_check
      _
    $region31: #{tpu_custom_call.1} parent=1 // pred_check_branch
      %72 = sbr.rel (0) target = $region33
    $region32: #{tpu_custom_call.1} parent=1 // pred_region
      %74 = dma.done [#allocation6], 512
    $region33: #{tpu_custom_call.1} parent=1 // pred_fallthru
      _
    // Predicated region
    $region34: #{tpu_custom_call.1} parent=1 // pred_check
      _
    $region35: #{tpu_custom_call.1} parent=1 // pred_check_branch
      %76 = sbr.rel (0) target = $region37
    $region36: #{tpu_custom_call.1} parent=1 // pred_region
      %78 = dma.done [#allocation6], 8192
    $region37: #{tpu_custom_call.1} parent=1 // pred_fallthru
      _
    // Predicated region
    $region38: #{tpu_custom_call.1} parent=1 // pred_check
      _
    $region39: #{tpu_custom_call.1} parent=1 // pred_check_branch
      %80 = sbr.rel (0) target = $region41
    $region40: #{tpu_custom_call.1} parent=1 // pred_region
      %82 = dma.done [#allocation9], 2048
    $region41: #{tpu_custom_call.1} parent=1 // pred_fallthru
      _
    %v83 = vld [vmem:[#allocation2] sm:$0xff]
    %v84 = vld [vmem:[#allocation5] sm:$0x1f]
    %v85 = vld [vmem:[#allocation5 + $0x8] sm:$0x1f]
    %v86 = vld [vmem:[#allocation5 + $0x10] sm:$0x1f]
    %v87 = vld [vmem:[#allocation5 + $0x18] sm:$0x1f]
    %vm88 = vcmask 39936
    %v90 = vsel %vm88, %v83, 0
    %vm92 = vcmask 1044480
    %v94 = vsel %vm92, %v84, 0
    %v97 = vsel %vm92, %v85, 0
    %v100 = vsel %vm92, %v86, 0
    %v103 = vsel %vm92, %v87, 0
    %105 = vmatpush.msra.mxu0 0.0
    %106 = vmatpush.msra.mxu0 0.0
    %107 = vmatpush.msra.mxu0 0.0
    %108 = vmatpush.msra.mxu0 0.0
    %109 = vmatpush.msra.mxu0 0.0
    %110 = vmatpush.msra.mxu0 0.0
    %111 = vmatpush.msra.mxu0 0.0
    %112 = vmatpush.msra.mxu0 0.0
    %113 = vmatpush.msra.mxu0 0.0
    %114 = vmatpush.msra.mxu0 0.0
    %115 = vmatpush.msra.mxu0 0.0
    %116 = vmatpush.msra.mxu0 0.0
    %117 = vmatpush.msra.mxu0 0.0
    %118 = vmatpush.msra.mxu0 0.0
    %119 = vmatpush.msra.mxu0 0.0
    %120 = vmatpush.msra.mxu0 %v94
    %121 = vmatmul.f32.gmra.mxu0 %v90
    %v122 = vpop.f32.mrf.mxu0
    %v123 = vadd.f32 0.0, %v122
    %124 = vdwg.mxu0
    %125 = vmatpush.msra.mxu0 0.0
    %126 = vmatpush.msra.mxu0 0.0
    %127 = vmatpush.msra.mxu0 0.0
    %128 = vmatpush.msra.mxu0 0.0
    %129 = vmatpush.msra.mxu0 0.0
    %130 = vmatpush.msra.mxu0 0.0
    %131 = vmatpush.msra.mxu0 0.0
    %132 = vmatpush.msra.mxu0 0.0
    %133 = vmatpush.msra.mxu0 0.0
    %134 = vmatpush.msra.mxu0 0.0
    %135 = vmatpush.msra.mxu0 0.0
    %136 = vmatpush.msra.mxu0 0.0
    %137 = vmatpush.msra.mxu0 0.0
    %138 = vmatpush.msra.mxu0 0.0
    %139 = vmatpush.msra.mxu0 0.0
    %140 = vmatpush.msra.mxu0 %v97
    %141 = vmatmul.f32.gmra.mxu0 %v90
    %v142 = vpop.f32.mrf.mxu0
    %v143 = vadd.f32 0.0, %v142
    %144 = vdwg.mxu0
    %145 = vmatpush.msra.mxu0 0.0
    %146 = vmatpush.msra.mxu0 0.0
    %147 = vmatpush.msra.mxu0 0.0
    %148 = vmatpush.msra.mxu0 0.0
    %149 = vmatpush.msra.mxu0 0.0
    %150 = vmatpush.msra.mxu0 0.0
    %151 = vmatpush.msra.mxu0 0.0
    %152 = vmatpush.msra.mxu0 0.0
    %153 = vmatpush.msra.mxu0 0.0
    %154 = vmatpush.msra.mxu0 0.0
    %155 = vmatpush.msra.mxu0 0.0
    %156 = vmatpush.msra.mxu0 0.0
    %157 = vmatpush.msra.mxu0 0.0
    %158 = vmatpush.msra.mxu0 0.0
    %159 = vmatpush.msra.mxu0 0.0
    %160 = vmatpush.msra.mxu0 %v100
    %161 = vmatmul.f32.gmra.mxu0 %v90
    %v162 = vpop.f32.mrf.mxu0
    %v163 = vadd.f32 0.0, %v162
    %164 = vdwg.mxu0
    %165 = vmatpush.msra.mxu0 0.0
    %166 = vmatpush.msra.mxu0 0.0
    %167 = vmatpush.msra.mxu0 0.0
    %168 = vmatpush.msra.mxu0 0.0
    %169 = vmatpush.msra.mxu0 0.0
    %170 = vmatpush.msra.mxu0 0.0
    %171 = vmatpush.msra.mxu0 0.0
    %172 = vmatpush.msra.mxu0 0.0
    %173 = vmatpush.msra.mxu0 0.0
    %174 = vmatpush.msra.mxu0 0.0
    %175 = vmatpush.msra.mxu0 0.0
    %176 = vmatpush.msra.mxu0 0.0
    %177 = vmatpush.msra.mxu0 0.0
    %178 = vmatpush.msra.mxu0 0.0
    %179 = vmatpush.msra.mxu0 0.0
    %180 = vmatpush.msra.mxu0 %v103
    %181 = vmatmul.f32.gmra.mxu0 %v90
    %v182 = vpop.f32.mrf.mxu0
    %v183 = vadd.f32 0.0, %v182
    %184 = vdwg.mxu0
    %v185 = vmax.f32 %v123, 0.0
    %v186 = vmax.f32 %v143, 0.0
    %v187 = vmax.f32 %v163, 0.0
    %v188 = vmax.f32 %v183, 0.0
    %v189 = vld [vmem:[#allocation7] sm:$0xff]
    %v190 = vld [vmem:[#allocation7 + $0x8] sm:$0xff]
    %v191 = vld [vmem:[#allocation7 + $0x10] sm:$0xff]
    %v192 = vld [vmem:[#allocation7 + $0x18] sm:$0xff]
    %v193 = vld [vmem:[#allocation7 + $0x20] sm:$0xff]
    %v194 = vld [vmem:[#allocation7 + $0x28] sm:$0xff]
    %v195 = vld [vmem:[#allocation7 + $0x30] sm:$0xff]
    %v196 = vld [vmem:[#allocation7 + $0x38] sm:$0xff]
    %v197 = vld [vmem:[#allocation7 + $0x40] sm:$0xff]
    %v198 = vld [vmem:[#allocation7 + $0x48] sm:$0xff]
    %v199 = vld [vmem:[#allocation7 + $0x50] sm:$0xff]
    %v200 = vld [vmem:[#allocation7 + $0x58] sm:$0xff]
    %v201 = vld [vmem:[#allocation7 + $0x60] sm:$0xff]
    %v202 = vld [vmem:[#allocation7 + $0x68] sm:$0xff]
    %v203 = vld [vmem:[#allocation7 + $0x70] sm:$0xff]
    %v204 = vld [vmem:[#allocation7 + $0x78] sm:$0xff]
    %v205 = vld [vmem:[#allocation7 + $0x80] sm:$0xff]
    %v206 = vld [vmem:[#allocation7 + $0x88] sm:$0xff]
    %v207 = vld [vmem:[#allocation7 + $0x90] sm:$0xff]
    %v208 = vld [vmem:[#allocation7 + $0x98] sm:$0xff]
    %v209 = vld [vmem:[#allocation7 + $0xa0] sm:$0xff]
    %v210 = vld [vmem:[#allocation7 + $0xa8] sm:$0xff]
    %v211 = vld [vmem:[#allocation7 + $0xb0] sm:$0xff]
    %v212 = vld [vmem:[#allocation7 + $0xb8] sm:$0xff]
    %v213 = vld [vmem:[#allocation7 + $0xc0] sm:$0xff]
    %v214 = vld [vmem:[#allocation7 + $0xc8] sm:$0xff]
    %v215 = vld [vmem:[#allocation7 + $0xd0] sm:$0xff]
    %v216 = vld [vmem:[#allocation7 + $0xd8] sm:$0xff]
    %v217 = vld [vmem:[#allocation7 + $0xe0] sm:$0xff]
    %v218 = vld [vmem:[#allocation7 + $0xe8] sm:$0xff]
    %v219 = vld [vmem:[#allocation7 + $0xf0] sm:$0xff]
    %v220 = vld [vmem:[#allocation7 + $0xf8] sm:$0xff]
    %v221 = vld [vmem:[#allocation7 + $0x100] sm:$0xff]
    %v222 = vld [vmem:[#allocation7 + $0x108] sm:$0xff]
    %v223 = vld [vmem:[#allocation7 + $0x110] sm:$0xff]
    %v224 = vld [vmem:[#allocation7 + $0x118] sm:$0xff]
    %v225 = vld [vmem:[#allocation7 + $0x120] sm:$0xff]
    %v226 = vld [vmem:[#allocation7 + $0x128] sm:$0xff]
    %v227 = vld [vmem:[#allocation7 + $0x130] sm:$0xff]
    %v228 = vld [vmem:[#allocation7 + $0x138] sm:$0xff]
    %v229 = vld [vmem:[#allocation7 + $0x140] sm:$0xff]
    %v230 = vld [vmem:[#allocation7 + $0x148] sm:$0xff]
    %v231 = vld [vmem:[#allocation7 + $0x150] sm:$0xff]
    %v232 = vld [vmem:[#allocation7 + $0x158] sm:$0xff]
    %v233 = vld [vmem:[#allocation7 + $0x160] sm:$0xff]
    %v234 = vld [vmem:[#allocation7 + $0x168] sm:$0xff]
    %v235 = vld [vmem:[#allocation7 + $0x170] sm:$0xff]
    %v236 = vld [vmem:[#allocation7 + $0x178] sm:$0xff]
    %v237 = vld [vmem:[#allocation7 + $0x180] sm:$0xff]
    %v238 = vld [vmem:[#allocation7 + $0x188] sm:$0xff]
    %v239 = vld [vmem:[#allocation7 + $0x190] sm:$0xff]
    %v240 = vld [vmem:[#allocation7 + $0x198] sm:$0xff]
    %v241 = vld [vmem:[#allocation7 + $0x1a0] sm:$0xff]
    %v242 = vld [vmem:[#allocation7 + $0x1a8] sm:$0xff]
    %v243 = vld [vmem:[#allocation7 + $0x1b0] sm:$0xff]
    %v244 = vld [vmem:[#allocation7 + $0x1b8] sm:$0xff]
    %v245 = vld [vmem:[#allocation7 + $0x1c0] sm:$0xff]
    %v246 = vld [vmem:[#allocation7 + $0x1c8] sm:$0xff]
    %v247 = vld [vmem:[#allocation7 + $0x1d0] sm:$0xff]
    %v248 = vld [vmem:[#allocation7 + $0x1d8] sm:$0xff]
    %v249 = vld [vmem:[#allocation7 + $0x1e0] sm:$0xff]
    %v250 = vld [vmem:[#allocation7 + $0x1e8] sm:$0xff]
    %v251 = vld [vmem:[#allocation7 + $0x1f0] sm:$0xff]
    %v252 = vld [vmem:[#allocation7 + $0x1f8] sm:$0xff]
    %v253 = vld [vmem:[%s3] sm:$0x1]
    %v255 = vperm.slane %v253, 0
    %257 = vmatpush.msra.mxu0 %v204
    %258 = vmatpush.msra.mxu0 %v203
    %259 = vmatpush.msra.mxu0 %v202
    %260 = vmatpush.msra.mxu0 %v201
    %261 = vmatpush.msra.mxu0 %v200
    %262 = vmatpush.msra.mxu0 %v199
    %263 = vmatpush.msra.mxu0 %v198
    %264 = vmatpush.msra.mxu0 %v197
    %265 = vmatpush.msra.mxu0 %v196
    %266 = vmatpush.msra.mxu0 %v195
    %267 = vmatpush.msra.mxu0 %v194
    %268 = vmatpush.msra.mxu0 %v193
    %269 = vmatpush.msra.mxu0 %v192
    %270 = vmatpush.msra.mxu0 %v191
    %271 = vmatpush.msra.mxu0 %v190
    %272 = vmatpush.msra.mxu0 %v189
    %273 = vmatmul.f32.gmra.mxu0 %v185
    %v274 = vpop.f32.mrf.mxu0
    %v275 = vadd.f32 %v255, %v274
    %276 = vdwg.mxu0
    %277 = vmatpush.msra.mxu0 %v220
    %278 = vmatpush.msra.mxu0 %v219
    %279 = vmatpush.msra.mxu0 %v218
    %280 = vmatpush.msra.mxu0 %v217
    %281 = vmatpush.msra.mxu0 %v216
    %282 = vmatpush.msra.mxu0 %v215
    %283 = vmatpush.msra.mxu0 %v214
    %284 = vmatpush.msra.mxu0 %v213
    %285 = vmatpush.msra.mxu0 %v212
    %286 = vmatpush.msra.mxu0 %v211
    %287 = vmatpush.msra.mxu0 %v210
    %288 = vmatpush.msra.mxu0 %v209
    %289 = vmatpush.msra.mxu0 %v208
    %290 = vmatpush.msra.mxu0 %v207
    %291 = vmatpush.msra.mxu0 %v206
    %292 = vmatpush.msra.mxu0 %v205
    %293 = vmatmul.f32.gmra.mxu0 %v186
    %v294 = vpop.f32.mrf.mxu0
    %v295 = vadd.f32 %v275, %v294
    %296 = vdwg.mxu0
    %297 = vmatpush.msra.mxu0 %v236
    %298 = vmatpush.msra.mxu0 %v235
    %299 = vmatpush.msra.mxu0 %v234
    %300 = vmatpush.msra.mxu0 %v233
    %301 = vmatpush.msra.mxu0 %v232
    %302 = vmatpush.msra.mxu0 %v231
    %303 = vmatpush.msra.mxu0 %v230
    %304 = vmatpush.msra.mxu0 %v229
    %305 = vmatpush.msra.mxu0 %v228
    %306 = vmatpush.msra.mxu0 %v227
    %307 = vmatpush.msra.mxu0 %v226
    %308 = vmatpush.msra.mxu0 %v225
    %309 = vmatpush.msra.mxu0 %v224
    %310 = vmatpush.msra.mxu0 %v223
    %311 = vmatpush.msra.mxu0 %v222
    %312 = vmatpush.msra.mxu0 %v221
    %313 = vmatmul.f32.gmra.mxu0 %v187
    %v314 = vpop.f32.mrf.mxu0
    %v315 = vadd.f32 %v295, %v314
    %316 = vdwg.mxu0
    %317 = vmatpush.msra.mxu0 %v252
    %318 = vmatpush.msra.mxu0 %v251
    %319 = vmatpush.msra.mxu0 %v250
    %320 = vmatpush.msra.mxu0 %v249
    %321 = vmatpush.msra.mxu0 %v248
    %322 = vmatpush.msra.mxu0 %v247
    %323 = vmatpush.msra.mxu0 %v246
    %324 = vmatpush.msra.mxu0 %v245
    %325 = vmatpush.msra.mxu0 %v244
    %326 = vmatpush.msra.mxu0 %v243
    %327 = vmatpush.msra.mxu0 %v242
    %328 = vmatpush.msra.mxu0 %v241
    %329 = vmatpush.msra.mxu0 %v240
    %330 = vmatpush.msra.mxu0 %v239
    %331 = vmatpush.msra.mxu0 %v238
    %332 = vmatpush.msra.mxu0 %v237
    %333 = vmatmul.f32.gmra.mxu0 %v188
    %v334 = vpop.f32.mrf.mxu0
    %v335 = vadd.f32 %v315, %v334
    %336 = vdwg.mxu0
    %v337 = vmax.f32 %v335, 0.0
    %v338 = vld [vmem:[#allocation8] sm:$0xff]
    %v339 = vld [vmem:[#allocation8 + $0x8] sm:$0xff]
    %v340 = vld [vmem:[#allocation8 + $0x10] sm:$0xff]
    %v341 = vld [vmem:[#allocation8 + $0x18] sm:$0xff]
    %v342 = vld [vmem:[#allocation8 + $0x20] sm:$0xff]
    %v343 = vld [vmem:[#allocation8 + $0x28] sm:$0xff]
    %v344 = vld [vmem:[#allocation8 + $0x30] sm:$0xff]
    %v345 = vld [vmem:[#allocation8 + $0x38] sm:$0xff]
    %v346 = vld [vmem:[#allocation8 + $0x40] sm:$0xff]
    %v347 = vld [vmem:[#allocation8 + $0x48] sm:$0xff]
    %v348 = vld [vmem:[#allocation8 + $0x50] sm:$0xff]
    %v349 = vld [vmem:[#allocation8 + $0x58] sm:$0xff]
    %v350 = vld [vmem:[#allocation8 + $0x60] sm:$0xff]
    %v351 = vld [vmem:[#allocation8 + $0x68] sm:$0xff]
    %v352 = vld [vmem:[#allocation8 + $0x70] sm:$0xff]
    %v353 = vld [vmem:[#allocation8 + $0x78] sm:$0xff]
    %354 = vmatpush.msra.mxu0 %v353
    %355 = vmatpush.msra.mxu0 %v352
    %356 = vmatpush.msra.mxu0 %v351
    %357 = vmatpush.msra.mxu0 %v350
    %358 = vmatpush.msra.mxu0 %v349
    %359 = vmatpush.msra.mxu0 %v348
    %360 = vmatpush.msra.mxu0 %v347
    %361 = vmatpush.msra.mxu0 %v346
    %362 = vmatpush.msra.mxu0 %v345
    %363 = vmatpush.msra.mxu0 %v344
    %364 = vmatpush.msra.mxu0 %v343
    %365 = vmatpush.msra.mxu0 %v342
    %366 = vmatpush.msra.mxu0 %v341
    %367 = vmatpush.msra.mxu0 %v340
    %368 = vmatpush.msra.mxu0 %v339
    %369 = vmatpush.msra.mxu0 %v338
    %370 = vmatmul.f32.gmra.mxu0 %v337
    %v371 = vpop.f32.mrf.mxu0
    %v372 = vadd.f32 0.0, %v371
    %373 = vdwg.mxu0
    %v374 = vld [vmem:[%s5] sm:$0x1]
    %v376 = vperm.slane %v374, 0
    %v378 = vadd.f32 %v372, %v376
    %vm379 = vcmask 64512
    %380 = vst.msk [vmem:[#allocation10] sm:$0xff] %vm379, %v378
    // Predicated region
    $region42: #{tpu_custom_call.1} parent=1 // pred_check
      _
    $region43: #{tpu_custom_call.1} parent=1 // pred_check_branch
      %382 = sbr.rel (0) target = $region45
    $region44: #{tpu_custom_call.1} parent=1 // pred_region
      %384 = vsyncadd [#allocation4], 0
      %s386 = sshll.u32 [#allocation10], 4
      %s387 = int_to_ptr.vmem [resolvable:$true] %s386
      %s388 = sshll.u32 %s6, 4
      %s389 = int_to_ptr.hbm [resolvable:$true] %s388
      %391 = dma.vmem_to_hbm [thread:$0]  %s387, 128, %s389, [#allocation4]
    $region45: #{tpu_custom_call.1} parent=1 // pred_fallthru
      _
    // Predicated region
    $region46: #{tpu_custom_call.1} parent=1 // pred_check
      _
    $region47: #{tpu_custom_call.1} parent=1 // pred_check_branch
      %393 = sbr.rel (0) target = $region49
    $region48: #{tpu_custom_call.1} parent=1 // pred_region
      %395 = dma.done [#allocation4], 128
    $region49: #{tpu_custom_call.1} parent=1 // pred_fallthru
      _
    %396 = vsyncpa [#allocation3], 1
    %397 = vsyncpa [#allocation6], 1
    %398 = vsyncpa [#allocation9], 1
    %399 = vsyncpa [#allocation4], 1

</llo_original>
